<compile_context>
chip_gen: v7x
topology: tpu7x:2x2x1
jax: 0.10.0
libtpu: 0.0.40
codegen_flags: <defaults>
</compile_context>

<pallas_src>
import functools
import math

import jax
import jax.numpy as jnp
from jax.experimental import pallas as pl
from jax.experimental.pallas import tpu as pltpu

_LANE = 128


def _round_up(a, b):
    return -(-a // b) * b


def _residual_math(x, pv_ref, w1_ref, w2_ref, *, seg_len, valid_len):
    """Shared math for one (C, Lt) tile.

    The lane axis holds Lt // seg_len length-`seg_len` segments (one sample
    each); only the first `valid_len` lanes of each segment are real data.
    """
    C, Lt = x.shape

    # (1, Lt) lane-position masks; jnp.where broadcasts them along sublanes.
    lane = jax.lax.broadcasted_iota(jnp.int32, (1, Lt), 1)
    pos = lane if seg_len == Lt else lane % seg_len
    not_first = pos != 0                      # prev neighbour is out of sample
    not_last = pos != (valid_len - 1)         # next neighbour is out of sample

    zcol = jnp.zeros((C, 1), jnp.float32)     # hoisted; reused by both convs

    # Packed per-channel params:
    # [bn0 scale, bn0 shift, conv1 bias, bn1 scale, bn1 shift, conv2 bias, 0, 0]
    s0 = pv_ref[:, 0:1]
    t0 = pv_ref[:, 1:2]
    b1 = pv_ref[:, 2:3]
    s1 = pv_ref[:, 3:4]
    t1 = pv_ref[:, 4:5]
    b2 = pv_ref[:, 5:6]

    def bn_relu(h, scale, shift):
        h = jnp.maximum(scale * h + shift, 0.0)
        if seg_len != valid_len:              # zero intra-segment padding lanes
            h = jnp.where(pos < valid_len, h, 0.0)
        return h

    def conv3(h, w_ref, bias):
        # 'same' k=3 conv: neighbours are +/-1 lane shifts; segment edges see 0.
        h_prev = jnp.where(not_first,
                           jnp.concatenate([zcol, h[:, :-1]], axis=1), 0.0)
        h_next = jnp.where(not_last,
                           jnp.concatenate([h[:, 1:], zcol], axis=1), 0.0)
        # Three accumulating MXU dots with tap-major (C, C) weights -- no
        # (3C, Lt) H3 temporary.  bf16 weights upcast at the MXU feed.
        y = jnp.dot(w_ref[0], h_prev, preferred_element_type=jnp.float32)
        y = y + jnp.dot(w_ref[1], h, preferred_element_type=jnp.float32)
        y = y + jnp.dot(w_ref[2], h_next, preferred_element_type=jnp.float32)
        return y + bias

    h = bn_relu(x, s0, t0)                    # BN0 (folded affine) + ReLU
    h = conv3(h, w1_ref, b1)                  # Conv1d #1
    h = bn_relu(h, s1, t1)                    # BN1 + ReLU
    h = conv3(h, w2_ref, b2)                  # Conv1d #2
    return x + h                              # residual add


def _fold_kernel(x_ref, pv_ref, w1_ref, w2_ref, o_ref, *, seg_len, valid_len):
    # Batch folded into lanes: tile is (C, lt) containing whole samples.
    o_ref[...] = _residual_math(x_ref[...], pv_ref, w1_ref, w2_ref,
                                seg_len=seg_len, valid_len=valid_len)


def _ncl_kernel(x_ref, pv_ref, w1_ref, w2_ref, o_ref, *, seg_len, valid_len):
    # Direct (B, C, L) tiling: one sample per grid step, no HBM transposes.
    o_ref[0] = _residual_math(x_ref[0], pv_ref, w1_ref, w2_ref,
                              seg_len=seg_len, valid_len=valid_len)


def fold_params(params, *, weight_dtype=jnp.bfloat16):
    """PyTorch-style params -> kernel layout.

    BatchNorm running stats are folded into a per-channel affine (inference
    mode).  Conv weights (Co, Ci, 3) become tap-major (3, Co, Ci) stored in
    `weight_dtype`; the six per-channel vectors are packed into one (C, 8)
    operand.
    """
    eps = params["eps"]

    def bn_affine(bn):
        gamma, beta, mean, var = bn
        scale = gamma / jnp.sqrt(var + eps)
        return scale, beta - mean * scale

    s0, t0 = bn_affine(params["bn0"])
    s1, t1 = bn_affine(params["bn1"])
    C = s0.shape[0]
    pad = jnp.zeros((C,), jnp.float32)
    pv = jnp.stack([s0, t0, params["b1"], s1, t1, params["b2"], pad, pad],
                   axis=1).astype(jnp.float32)

    def to_taps(w):                            # (Co, Ci, 3) -> (3, Co, Ci)
        return jnp.transpose(w, (2, 0, 1)).astype(weight_dtype)

    return pv, to_taps(params["w1"]), to_taps(params["w2"])


def residual_module(x, params, *, weight_dtype=jnp.bfloat16,
                    tile_budget_bytes=24 << 20, lcm_cap=4096):
    """Forward pass of ResidualModule on an NCL (batch, featuredim, length) array."""
    B, C, L = x.shape
    pv, w1, w2 = fold_params(params, weight_dtype=weight_dtype)
    w_bytes = jnp.dtype(weight_dtype).itemsize
    # VMEM resident besides the activation tiles (double-buffered constants).
    fixed_bytes = 2 * (2 * 3 * C * C * w_bytes + C * 8 * 4)

    compiler_params = pltpu.CompilerParams(
        dimension_semantics=("parallel",),
        # Single value that fits every generation (v7x has only 64 MiB VMEM).
        vmem_limit_bytes=48 * 1024 * 1024)

    param_specs = [
        pl.BlockSpec((C, 8), lambda i: (0, 0)),        # packed BN affines/biases
        pl.BlockSpec((3, C, C), lambda i: (0, 0, 0)),  # conv1 taps
        pl.BlockSpec((3, C, C), lambda i: (0, 0, 0)),  # conv2 taps
    ]

    # ---- Direct NCL path: L already lane friendly -> skip the HBM transposes.
    if L % _LANE == 0 and (10 * C * L * 4 + fixed_bytes) <= tile_budget_bytes:
        kernel = functools.partial(_ncl_kernel, seg_len=L, valid_len=L)
        return pl.pallas_call(
            kernel,
            out_shape=jax.ShapeDtypeStruct((B, C, L), jnp.float32),
            grid_spec=pltpu.PrefetchScalarGridSpec(
                num_scalar_prefetch=0,
                grid=(B,),
                in_specs=[pl.BlockSpec((1, C, L), lambda b: (b, 0, 0))]
                + param_specs,
                out_specs=pl.BlockSpec((1, C, L), lambda b: (b, 0, 0)),
            ),
            compiler_params=compiler_params,
        )(x.astype(jnp.float32), pv, w1, w2)

    # ---- Fold path: (B, C, L) -> (C, B*Lp) with the batch folded into lanes.
    lcm = L * _LANE // math.gcd(L, _LANE)
    if lcm <= lcm_cap:
        Lp, base = L, lcm              # pack whole samples into 128-lane blocks
    else:
        Lp = _round_up(L, _LANE)       # pad each sample up to a lane multiple
        base = Lp
        x = jnp.pad(x, ((0, 0), (0, 0), (0, Lp - L)))

    x2d = jnp.transpose(x, (1, 0, 2)).reshape(C, B * Lp).astype(jnp.float32)
    n = B * Lp

    # Largest lane tile under the VMEM budget: 2 in + 2 out pipeline buffers
    # plus ~6 live f32 intermediates per lane.
    per_lane = 10 * C * 4
    lt = max(base, ((tile_budget_bytes - fixed_bytes) // (per_lane * base)) * base)
    lt = min(lt, _round_up(n, base))
    if n > base:                       # >=2 grid blocks keeps both v7x TCs busy
        lt = min(lt, _round_up(-(-n // 2), base))
    n_pad = _round_up(n, lt)
    if n_pad != n:
        x2d = jnp.pad(x2d, ((0, 0), (0, n_pad - n)))   # pad lanes are discarded

    kernel = functools.partial(_fold_kernel, seg_len=Lp, valid_len=L)
    out2d = pl.pallas_call(
        kernel,
        out_shape=jax.ShapeDtypeStruct((C, n_pad), jnp.float32),
        grid_spec=pltpu.PrefetchScalarGridSpec(
            num_scalar_prefetch=0,
            grid=(n_pad // lt,),
            in_specs=[pl.BlockSpec((C, lt), lambda i: (0, i))] + param_specs,
            out_specs=pl.BlockSpec((C, lt), lambda i: (0, i)),
        ),
        compiler_params=compiler_params,
    )(x2d, pv, w1, w2)

    out = out2d[:, :n].reshape(C, B, Lp)[:, :, :L]
    return jnp.transpose(out, (1, 0, 2))


def make_params(key, featuredim):
    """Deterministic parameters mirroring the module's __init__ shapes."""
    C = featuredim
    ks = jax.random.split(key, 12)

    def bn(kg, kb, km, kv):
        gamma = 1.0 + 0.1 * jax.random.normal(kg, (C,), jnp.float32)
        beta = 0.1 * jax.random.normal(kb, (C,), jnp.float32)
        mean = 0.1 * jax.random.normal(km, (C,), jnp.float32)
        var = 1.0 + 0.1 * jax.random.uniform(kv, (C,), jnp.float32)
        return gamma, beta, mean, var

    def conv(kw, kb):
        bound = 1.0 / jnp.sqrt(3.0 * C)
        w = jax.random.uniform(kw, (C, C, 3), jnp.float32, -bound, bound)
        b = jax.random.uniform(kb, (C,), jnp.float32, -bound, bound)
        return w, b

    bn0 = bn(*ks[0:4])
    bn1 = bn(*ks[4:8])
    w1, b1 = conv(ks[8], ks[9])
    w2, b2 = conv(ks[10], ks[11])
    return dict(bn0=bn0, bn1=bn1, w1=w1, b1=b1, w2=w2, b2=b2, eps=1e-5)


def reference(x, p):
    """Pure-JAX reference of the same forward pass."""
    eps = p["eps"]

    def bn(h, bn_p):
        g, b, m, v = bn_p
        return (g[None, :, None] * (h - m[None, :, None])
                / jnp.sqrt(v[None, :, None] + eps) + b[None, :, None])

    def conv(h, w, b):  # w: (Co, Ci, 3), 'same' padding, kernel 3
        zero = jnp.zeros(h.shape[:-1] + (1,), h.dtype)
        hp = jnp.concatenate([zero, h[..., :-1]], axis=-1)
        hn = jnp.concatenate([h[..., 1:], zero], axis=-1)
        y = (jnp.einsum('oi,bil->bol', w[..., 0], hp)
             + jnp.einsum('oi,bil->bol', w[..., 1], h)
             + jnp.einsum('oi,bil->bol', w[..., 2], hn))
        return y + b[None, :, None]

    h = jax.nn.relu(bn(x, p["bn0"]))
    h = conv(h, p["w1"], p["b1"])
    h = jax.nn.relu(bn(h, p["bn1"]))
    h = conv(h, p["w2"], p["b2"])
    return x + h


if __name__ == "__main__":
    key = jax.random.PRNGKey(0)
    kx1, kx2, kp = jax.random.split(key, 3)

    B, C = 2, 8
    params = make_params(kp, C)

    # Exercise both tiling paths: small L (batch folded into lanes) and a
    # lane-friendly L (direct NCL tiling, no wrapper transposes).
    for x in (jax.random.normal(kx1, (B, C, 16), jnp.float32),
              jax.random.normal(kx2, (B, C, 128), jnp.float32)):
        ref = reference(x, params)

        out = jax.block_until_ready(
            residual_module(x, params, weight_dtype=jnp.float32))
        assert out.shape == x.shape
        err = float(jnp.max(jnp.abs(out - ref)))
        assert err < 1e-4, f"f32 weights: max abs err {err}"

        out_bf = jax.block_until_ready(residual_module(x, params))
        err_bf = float(jnp.max(jnp.abs(out_bf - ref)))
        # bf16 weight storage matches TPU default matmul precision; the looser
        # bound also covers backends whose reference matmul runs in full f32.
        assert err_bf < 3e-2, f"bf16 weights: max abs err {err_bf}"

    print("KERNEL_OK")
</pallas_src>

<mosaic_0001>
module attributes {stable_mosaic.version = 11 : i64} {
  func.func @_fold_kernel(%arg0: i32, %arg1: memref<8x128xf32, #tpu.memory_space<vmem>>, %arg2: memref<8x8xf32, #tpu.memory_space<vmem>>, %arg3: memref<3x8x8xf32, #tpu.memory_space<vmem>>, %arg4: memref<3x8x8xf32, #tpu.memory_space<vmem>>, %arg5: memref<8x128xf32, #tpu.memory_space<vmem>>) attributes {dimension_semantics = [#tpu.dimension_semantics<parallel>], iteration_bounds = array<i64: 1>, scalar_prefetch = 0 : i64, scratch_operands = 0 : i64, tpu.core_type = #tpu.core_type<tc>, window_params = [{transform_indices = @transform_0, window_bounds = array<i64: 8, 128>}, {pipeline_mode = #tpu.pipeline_mode<synchronous>, transform_indices = @transform_1, window_bounds = array<i64: 8, 8>}, {pipeline_mode = #tpu.pipeline_mode<synchronous>, transform_indices = @transform_2, window_bounds = array<i64: 3, 8, 8>}, {pipeline_mode = #tpu.pipeline_mode<synchronous>, transform_indices = @transform_3, window_bounds = array<i64: 3, 8, 8>}, {transform_indices = @transform_4, window_bounds = array<i64: 8, 128>}]} {
    %c0 = arith.constant 0 : index
    %c0_0 = arith.constant 0 : index
    %0 = vector.load %arg1[%c0, %c0_0] : memref<8x128xf32, #tpu.memory_space<vmem>>, vector<8x128xf32>
    %1 = tpu.iota {dimensions = array<i32: 1>} : vector<1x128xi32>
    %c16_i32 = arith.constant 16 : i32
    %c0_i32 = arith.constant 0 : i32
    %2 = arith.cmpi eq, %c16_i32, %c0_i32 : i32
    %c1_i32 = arith.constant 1 : i32
    %3 = arith.select %2, %c1_i32, %c16_i32 : i32
    %4 = vector.broadcast %3 : i32 to vector<1x128xi32>
    %5 = arith.remsi %1, %4 : vector<1x128xi32>
    %c0_i32_1 = arith.constant 0 : i32
    %6 = vector.broadcast %c0_i32_1 : i32 to vector<1x128xi32>
    %7 = arith.cmpi ne, %5, %6 : vector<1x128xi32>
    %c0_i32_2 = arith.constant 0 : i32
    %8 = vector.broadcast %c0_i32_2 : i32 to vector<1x128xi32>
    %9 = arith.cmpi slt, %5, %8 : vector<1x128xi32>
    %c0_i32_3 = arith.constant 0 : i32
    %10 = arith.cmpi slt, %3, %c0_i32_3 : i32
    %11 = vector.broadcast %10 : i1 to vector<1x128xi1>
    %12 = vector.broadcast %11 : vector<1x128xi1> to vector<1x128xi1>
    %13 = arith.xori %9, %12 : vector<1x128xi1>
    %14 = arith.andi %13, %7 : vector<1x128xi1>
    %15 = vector.broadcast %3 : i32 to vector<1x128xi32>
    %16 = arith.addi %5, %15 : vector<1x128xi32>
    %17 = arith.select %14, %16, %5 : vector<1x128xi1>, vector<1x128xi32>
    %c0_i32_4 = arith.constant 0 : i32
    %18 = vector.broadcast %c0_i32_4 : i32 to vector<1x128xi32>
    %19 = arith.cmpi ne, %17, %18 : vector<1x128xi32>
    %c15_i32 = arith.constant 15 : i32
    %20 = vector.broadcast %c15_i32 : i32 to vector<1x128xi32>
    %21 = arith.cmpi ne, %17, %20 : vector<1x128xi32>
    %cst = arith.constant 0.000000e+00 : f32
    %22 = vector.broadcast %cst : f32 to vector<8x1xf32>
    %c0_5 = arith.constant 0 : index
    %c0_6 = arith.constant 0 : index
    %23 = vector.load %arg2[%c0_5, %c0_6] : memref<8x8xf32, #tpu.memory_space<vmem>>, vector<8x1xf32>
    %c0_7 = arith.constant 0 : index
    %c1 = arith.constant 1 : index
    %24 = vector.load %arg2[%c0_7, %c1] : memref<8x8xf32, #tpu.memory_space<vmem>>, vector<8x1xf32>
    %c0_8 = arith.constant 0 : index
    %c2 = arith.constant 2 : index
    %25 = vector.load %arg2[%c0_8, %c2] : memref<8x8xf32, #tpu.memory_space<vmem>>, vector<8x1xf32>
    %c0_9 = arith.constant 0 : index
    %c3 = arith.constant 3 : index
    %26 = vector.load %arg2[%c0_9, %c3] : memref<8x8xf32, #tpu.memory_space<vmem>>, vector<8x1xf32>
    %c0_10 = arith.constant 0 : index
    %c4 = arith.constant 4 : index
    %27 = vector.load %arg2[%c0_10, %c4] : memref<8x8xf32, #tpu.memory_space<vmem>>, vector<8x1xf32>
    %c0_11 = arith.constant 0 : index
    %c5 = arith.constant 5 : index
    %28 = vector.load %arg2[%c0_11, %c5] : memref<8x8xf32, #tpu.memory_space<vmem>>, vector<8x1xf32>
    %29 = vector.broadcast %23 : vector<8x1xf32> to vector<8x128xf32>
    %30 = arith.mulf %29, %0 : vector<8x128xf32>
    %31 = vector.broadcast %24 : vector<8x1xf32> to vector<8x128xf32>
    %32 = arith.addf %30, %31 : vector<8x128xf32>
    %cst_12 = arith.constant 0.000000e+00 : f32
    %33 = vector.broadcast %cst_12 : f32 to vector<8x128xf32>
    %34 = arith.maximumf %32, %33 : vector<8x128xf32>
    %35 = vector.extract_strided_slice %34 {offsets = [0, 0], sizes = [8, 127], strides = [1, 1]} : vector<8x128xf32> to vector<8x127xf32>
    %36 = tpu.concatenate %22, %35 in 1 : vector<8x1xf32>, vector<8x127xf32> -> vector<8x128xf32>
    %cst_13 = arith.constant 0.000000e+00 : f32
    %37 = vector.shape_cast %19 : vector<1x128xi1> to vector<1x128xi1>
    %38 = vector.broadcast %37 : vector<1x128xi1> to vector<8x128xi1>
    %39 = vector.broadcast %cst_13 : f32 to vector<8x128xf32>
    %40 = arith.select %38, %36, %39 : vector<8x128xi1>, vector<8x128xf32>
    %41 = vector.extract_strided_slice %34 {offsets = [0, 1], sizes = [8, 127], strides = [1, 1]} : vector<8x128xf32> to vector<8x127xf32>
    %42 = tpu.concatenate %41, %22 in 1 : vector<8x127xf32>, vector<8x1xf32> -> vector<8x128xf32>
    %cst_14 = arith.constant 0.000000e+00 : f32
    %43 = vector.shape_cast %21 : vector<1x128xi1> to vector<1x128xi1>
    %44 = vector.broadcast %43 : vector<1x128xi1> to vector<8x128xi1>
    %45 = vector.broadcast %cst_14 : f32 to vector<8x128xf32>
    %46 = arith.select %44, %42, %45 : vector<8x128xi1>, vector<8x128xf32>
    %c0_15 = arith.constant 0 : index
    %c0_16 = arith.constant 0 : index
    %c0_17 = arith.constant 0 : index
    %47 = vector.load %arg3[%c0_15, %c0_16, %c0_17] : memref<3x8x8xf32, #tpu.memory_space<vmem>>, vector<1x8x8xf32>
    %48 = vector.shape_cast %47 : vector<1x8x8xf32> to vector<8x8xf32>
    %cst_18 = arith.constant dense<0.000000e+00> : vector<8x128xf32>
    %49 = tpu.matmul %48, %40, %cst_18 {dimension_numbers = #tpu.dot_dimension_numbers<[1], [0], [0], [1], [0, 0, 1, 1], [], []>} : vector<8x8xf32>, vector<8x128xf32>, vector<8x128xf32> -> vector<8x128xf32>
    %c1_19 = arith.constant 1 : index
    %c0_20 = arith.constant 0 : index
    %c0_21 = arith.constant 0 : index
    %50 = vector.load %arg3[%c1_19, %c0_20, %c0_21] : memref<3x8x8xf32, #tpu.memory_space<vmem>>, vector<1x8x8xf32>
    %51 = vector.shape_cast %50 : vector<1x8x8xf32> to vector<8x8xf32>
    %cst_22 = arith.constant dense<0.000000e+00> : vector<8x128xf32>
    %52 = tpu.matmul %51, %34, %cst_22 {dimension_numbers = #tpu.dot_dimension_numbers<[1], [0], [0], [1], [0, 0, 1, 1], [], []>} : vector<8x8xf32>, vector<8x128xf32>, vector<8x128xf32> -> vector<8x128xf32>
    %53 = arith.addf %49, %52 : vector<8x128xf32>
    %c2_23 = arith.constant 2 : index
    %c0_24 = arith.constant 0 : index
    %c0_25 = arith.constant 0 : index
    %54 = vector.load %arg3[%c2_23, %c0_24, %c0_25] : memref<3x8x8xf32, #tpu.memory_space<vmem>>, vector<1x8x8xf32>
    %55 = vector.shape_cast %54 : vector<1x8x8xf32> to vector<8x8xf32>
    %cst_26 = arith.constant dense<0.000000e+00> : vector<8x128xf32>
    %56 = tpu.matmul %55, %46, %cst_26 {dimension_numbers = #tpu.dot_dimension_numbers<[1], [0], [0], [1], [0, 0, 1, 1], [], []>} : vector<8x8xf32>, vector<8x128xf32>, vector<8x128xf32> -> vector<8x128xf32>
    %57 = arith.addf %53, %56 : vector<8x128xf32>
    %58 = vector.broadcast %25 : vector<8x1xf32> to vector<8x128xf32>
    %59 = arith.addf %57, %58 : vector<8x128xf32>
    %60 = vector.broadcast %26 : vector<8x1xf32> to vector<8x128xf32>
    %61 = arith.mulf %60, %59 : vector<8x128xf32>
    %62 = vector.broadcast %27 : vector<8x1xf32> to vector<8x128xf32>
    %63 = arith.addf %61, %62 : vector<8x128xf32>
    %cst_27 = arith.constant 0.000000e+00 : f32
    %64 = vector.broadcast %cst_27 : f32 to vector<8x128xf32>
    %65 = arith.maximumf %63, %64 : vector<8x128xf32>
    %66 = vector.extract_strided_slice %65 {offsets = [0, 0], sizes = [8, 127], strides = [1, 1]} : vector<8x128xf32> to vector<8x127xf32>
    %67 = tpu.concatenate %22, %66 in 1 : vector<8x1xf32>, vector<8x127xf32> -> vector<8x128xf32>
    %cst_28 = arith.constant 0.000000e+00 : f32
    %68 = vector.shape_cast %19 : vector<1x128xi1> to vector<1x128xi1>
    %69 = vector.broadcast %68 : vector<1x128xi1> to vector<8x128xi1>
    %70 = vector.broadcast %cst_28 : f32 to vector<8x128xf32>
    %71 = arith.select %69, %67, %70 : vector<8x128xi1>, vector<8x128xf32>
    %72 = vector.extract_strided_slice %65 {offsets = [0, 1], sizes = [8, 127], strides = [1, 1]} : vector<8x128xf32> to vector<8x127xf32>
    %73 = tpu.concatenate %72, %22 in 1 : vector<8x127xf32>, vector<8x1xf32> -> vector<8x128xf32>
    %cst_29 = arith.constant 0.000000e+00 : f32
    %74 = vector.shape_cast %21 : vector<1x128xi1> to vector<1x128xi1>
    %75 = vector.broadcast %74 : vector<1x128xi1> to vector<8x128xi1>
    %76 = vector.broadcast %cst_29 : f32 to vector<8x128xf32>
    %77 = arith.select %75, %73, %76 : vector<8x128xi1>, vector<8x128xf32>
    %c0_30 = arith.constant 0 : index
    %c0_31 = arith.constant 0 : index
    %c0_32 = arith.constant 0 : index
    %78 = vector.load %arg4[%c0_30, %c0_31, %c0_32] : memref<3x8x8xf32, #tpu.memory_space<vmem>>, vector<1x8x8xf32>
    %79 = vector.shape_cast %78 : vector<1x8x8xf32> to vector<8x8xf32>
    %cst_33 = arith.constant dense<0.000000e+00> : vector<8x128xf32>
    %80 = tpu.matmul %79, %71, %cst_33 {dimension_numbers = #tpu.dot_dimension_numbers<[1], [0], [0], [1], [0, 0, 1, 1], [], []>} : vector<8x8xf32>, vector<8x128xf32>, vector<8x128xf32> -> vector<8x128xf32>
    %c1_34 = arith.constant 1 : index
    %c0_35 = arith.constant 0 : index
    %c0_36 = arith.constant 0 : index
    %81 = vector.load %arg4[%c1_34, %c0_35, %c0_36] : memref<3x8x8xf32, #tpu.memory_space<vmem>>, vector<1x8x8xf32>
    %82 = vector.shape_cast %81 : vector<1x8x8xf32> to vector<8x8xf32>
    %cst_37 = arith.constant dense<0.000000e+00> : vector<8x128xf32>
    %83 = tpu.matmul %82, %65, %cst_37 {dimension_numbers = #tpu.dot_dimension_numbers<[1], [0], [0], [1], [0, 0, 1, 1], [], []>} : vector<8x8xf32>, vector<8x128xf32>, vector<8x128xf32> -> vector<8x128xf32>
    %84 = arith.addf %80, %83 : vector<8x128xf32>
    %c2_38 = arith.constant 2 : index
    %c0_39 = arith.constant 0 : index
    %c0_40 = arith.constant 0 : index
    %85 = vector.load %arg4[%c2_38, %c0_39, %c0_40] : memref<3x8x8xf32, #tpu.memory_space<vmem>>, vector<1x8x8xf32>
    %86 = vector.shape_cast %85 : vector<1x8x8xf32> to vector<8x8xf32>
    %cst_41 = arith.constant dense<0.000000e+00> : vector<8x128xf32>
    %87 = tpu.matmul %86, %77, %cst_41 {dimension_numbers = #tpu.dot_dimension_numbers<[1], [0], [0], [1], [0, 0, 1, 1], [], []>} : vector<8x8xf32>, vector<8x128xf32>, vector<8x128xf32> -> vector<8x128xf32>
    %88 = arith.addf %84, %87 : vector<8x128xf32>
    %89 = vector.broadcast %28 : vector<8x1xf32> to vector<8x128xf32>
    %90 = arith.addf %88, %89 : vector<8x128xf32>
    %91 = arith.addf %0, %90 : vector<8x128xf32>
    %c0_42 = arith.constant 0 : index
    %c0_43 = arith.constant 0 : index
    %92 = vector.load %arg5[%c0_42, %c0_43] : memref<8x128xf32, #tpu.memory_space<vmem>>, vector<8x128xf32>
    tpu.vector_store %arg5[%c0_42, %c0_43], %91 {strides = array<i32>} : memref<8x128xf32, #tpu.memory_space<vmem>>, vector<8x128xf32>,
    return
  }
  func.func @transform_0(%arg0: i32) -> (i32, i32) {
    %c0_i32 = arith.constant 0 : i32
    %c0_i32_0 = arith.constant 0 : i32
    return %c0_i32, %arg0 : i32, i32
  }
  func.func @transform_1(%arg0: i32) -> (i32, i32) {
    %c0_i32 = arith.constant 0 : i32
    %c0_i32_0 = arith.constant 0 : i32
    %c0_i32_1 = arith.constant 0 : i32
    return %c0_i32, %c0_i32_0 : i32, i32
  }
  func.func @transform_2(%arg0: i32) -> (i32, i32, i32) {
    %c0_i32 = arith.constant 0 : i32
    %c0_i32_0 = arith.constant 0 : i32
    %c0_i32_1 = arith.constant 0 : i32
    %c0_i32_2 = arith.constant 0 : i32
    return %c0_i32, %c0_i32_0, %c0_i32_1 : i32, i32, i32
  }
  func.func @transform_3(%arg0: i32) -> (i32, i32, i32) {
    %c0_i32 = arith.constant 0 : i32
    %c0_i32_0 = arith.constant 0 : i32
    %c0_i32_1 = arith.constant 0 : i32
    %c0_i32_2 = arith.constant 0 : i32
    return %c0_i32, %c0_i32_0, %c0_i32_1 : i32, i32, i32
  }
  func.func @transform_4(%arg0: i32) -> (i32, i32) {
    %c0_i32 = arith.constant 0 : i32
    %c0_i32_0 = arith.constant 0 : i32
    return %c0_i32, %arg0 : i32, i32
  }
}

</mosaic_0001>

<llo_original>
// kernel: tpu_custom_call.1
$region0: #{tpu_custom_call.1}
  #allocation0 [shape = 'u32[]', space=smem, size = 0x4, offset = 0x4, fixed_abs, tag = 'smem constant byte address 0x4 - core index']
  #allocation1 [shape = 'u32[144,128]{1,0:T(1,128)}', space=vmem, size = 0x12000, scoped, tag = 'internal scratch']
  %s0 = inlined_call_operand.hbm [shape: f32[8,128], index: 0, kind: input, shape index: {}]
  %s1 = inlined_call_operand.hbm [shape: f32[8,8], index: 1, kind: input, shape index: {}]
  %s2 = inlined_call_operand.hbm [shape: f32[3,8,8], index: 2, kind: input, shape index: {}]
  %s3 = inlined_call_operand.hbm [shape: f32[3,8,8], index: 3, kind: input, shape index: {}]
  %s4 = inlined_call_operand.hbm [shape: f32[8,128], index: 4, kind: output, shape index: {}]
  %s5 = sld [smem:[#allocation0]]
  $region42: #{tpu_custom_call.1} parent=0
    _
  %s7 = ssub.s32 1, %s5
  %s8 = scalar_select 0, %s7, %s5
  $region1: #{tpu_custom_call.1} parent=0
    #allocation2 [shape = 'u8[4096]{0}', space=vmem, size = 0x1000, scoped, tag = 'input window, operand 0, single buffered']
    #allocation3 [shape = 's32[1]{0}', space=sflag, size = 0x4, scoped, tag = 'scoped memory for tpu_custom_call.1']
    #allocation4 [shape = 's32[1]{0}', space=sflag, size = 0x4, scoped, tag = 'scoped memory for tpu_custom_call.1']
    #allocation5 [shape = 'u8[4096]{0}', space=vmem, size = 0x1000, scoped, tag = 'input window, operand 1, single buffered']
    #allocation6 [shape = 's32[1]{0}', space=sflag, size = 0x4, scoped, tag = 'scoped memory for tpu_custom_call.1']
    #allocation7 [shape = 'u8[12288]{0}', space=vmem, size = 0x3000, scoped, tag = 'input window, operand 2, single buffered']
    #allocation8 [shape = 'u8[12288]{0}', space=vmem, size = 0x3000, scoped, tag = 'input window, operand 3, single buffered']
    #allocation9 [shape = 's32[1]{0}', space=sflag, size = 0x4, scoped, tag = 'scoped memory for tpu_custom_call.1']
    #allocation10 [shape = 'u8[4096]{0}', space=vmem, size = 0x1000, scoped, tag = 'output window, operand 0, single buffered']
    %9 = vsyncpa [#allocation3], 0
    %10 = vsyncpa [#allocation6], 0
    %11 = vsyncpa [#allocation9], 0
    %12 = vsyncpa [#allocation4], 0
    // Predicated region
    $region2: #{tpu_custom_call.1} parent=1 // pred_check
      _
    $region3: #{tpu_custom_call.1} parent=1 // pred_check_branch
      %14 = sbr.rel (0) target = $region5
    $region4: #{tpu_custom_call.1} parent=1 // pred_region
      %s16 = ssub.s32 128, 128
      %17 = vsyncadd [#allocation3], %s16
      %s19 = sshll.u32 [#allocation2], 4
      %s20 = int_to_ptr.vmem [resolvable:$true] %s19
      %22 = dma.hbm_to_vmem [thread:$0]  %s0, 128, %s20, [#allocation3]
    $region5: #{tpu_custom_call.1} parent=1 // pred_fallthru
      _
    // Predicated region
    $region6: #{tpu_custom_call.1} parent=1 // pred_check
      _
    $region7: #{tpu_custom_call.1} parent=1 // pred_check_branch
      %24 = sbr.rel (0) target = $region9
    $region8: #{tpu_custom_call.1} parent=1 // pred_region
      %s26 = ssub.s32 128, 128
      %27 = vsyncadd [#allocation6], %s26
      %s29 = sshll.u32 [#allocation5], 4
      %s30 = int_to_ptr.vmem [resolvable:$true] %s29
      %32 = dma.hbm_to_vmem [thread:$0]  %s1, 128, %s30, [#allocation6]
    $region9: #{tpu_custom_call.1} parent=1 // pred_fallthru
      _
    // Predicated region
    $region10: #{tpu_custom_call.1} parent=1 // pred_check
      _
    $region11: #{tpu_custom_call.1} parent=1 // pred_check_branch
      %34 = sbr.rel (0) target = $region13
    $region12: #{tpu_custom_call.1} parent=1 // pred_region
      %s36 = ssub.s32 384, 384
      %37 = vsyncadd [#allocation6], %s36
      %s38 = sshll.u32 [#allocation7], 4
      %s39 = int_to_ptr.vmem [resolvable:$true] %s38
      %44 = dma.hbm_to_vmem [thread:$0]  %s2, 384, %s39, [#allocation6], 128, 128, 8
    $region13: #{tpu_custom_call.1} parent=1 // pred_fallthru
      _
    // Predicated region
    $region14: #{tpu_custom_call.1} parent=1 // pred_check
      _
    $region15: #{tpu_custom_call.1} parent=1 // pred_check_branch
      %46 = sbr.rel (0) target = $region17
    $region16: #{tpu_custom_call.1} parent=1 // pred_region
      %s48 = ssub.s32 384, 384
      %49 = vsyncadd [#allocation9], %s48
      %s50 = sshll.u32 [#allocation8], 4
      %s51 = int_to_ptr.vmem [resolvable:$true] %s50
      %56 = dma.hbm_to_vmem [thread:$0]  %s3, 384, %s51, [#allocation9], 128, 128, 8
    $region17: #{tpu_custom_call.1} parent=1 // pred_fallthru
      _
    // Predicated region
    $region18: #{tpu_custom_call.1} parent=1 // pred_check
      _
    $region19: #{tpu_custom_call.1} parent=1 // pred_check_branch
      %58 = sbr.rel (0) target = $region21
    $region20: #{tpu_custom_call.1} parent=1 // pred_region
      %59 = dma.done [#allocation3], 128
    $region21: #{tpu_custom_call.1} parent=1 // pred_fallthru
      _
    // Predicated region
    $region22: #{tpu_custom_call.1} parent=1 // pred_check
      _
    $region23: #{tpu_custom_call.1} parent=1 // pred_check_branch
      %61 = sbr.rel (0) target = $region25
    $region24: #{tpu_custom_call.1} parent=1 // pred_region
      %62 = dma.done [#allocation6], 128
    $region25: #{tpu_custom_call.1} parent=1 // pred_fallthru
      _
    // Predicated region
    $region26: #{tpu_custom_call.1} parent=1 // pred_check
      _
    $region27: #{tpu_custom_call.1} parent=1 // pred_check_branch
      %64 = sbr.rel (0) target = $region29
    $region28: #{tpu_custom_call.1} parent=1 // pred_region
      %65 = dma.done [#allocation6], 384
    $region29: #{tpu_custom_call.1} parent=1 // pred_fallthru
      _
    // Predicated region
    $region30: #{tpu_custom_call.1} parent=1 // pred_check
      _
    $region31: #{tpu_custom_call.1} parent=1 // pred_check_branch
      %67 = sbr.rel (0) target = $region33
    $region32: #{tpu_custom_call.1} parent=1 // pred_region
      %68 = dma.done [#allocation9], 384
    $region33: #{tpu_custom_call.1} parent=1 // pred_fallthru
      _
    %v69 = vld [vmem:[#allocation2] sm:$0xff]
    %v70 = vlaneseq
    %v71 = vand.u32 %v70, 127
    %vm72 = vcmp.lt.s32.totalorder %v71, 0
    %v73 = vsub.s32 0, %v71
    %v74 = vsel %vm72, %v73, %v71
    %v75 = vshrl.u32 %v74, 4
    %v76 = vand.u32 %v74, 15
    %v77 = vsub.s32 0, %v76
    %v78 = vsel %vm72, %v77, %v76
    %vm79 = vcmp.ne.s32.totalorder %v78, 0
    %vm80 = vcmp.lt.s32.totalorder %v78, 0
    %vm81 = vmand %vm80, %vm79
    %v82 = vadd.s32 %v78, 16
    %v83 = vsel %vm81, %v82, %v78
    %vm84 = vcmp.ne.s32.totalorder %v83, 0
    %vm85 = vcmp.ne.s32.totalorder %v83, 15
    %v86 = vld [vmem:[#allocation5] sm:$0xff]
    %88 = vset.pattern.permute.xlu0 0
    %89 = vperm.xlu0 %88, %v86
    %v90 = vpop.permute.xlu0 %89
    %v92 = vmul.f32 %v90, %v69
    %93 = vset.pattern.permute.xlu0 1
    %94 = vperm.xlu0 %93, %v86
    %v95 = vpop.permute.xlu0 %94
    %v97 = vadd.f32 %v92, %v95
    %v98 = vmax.f32 %v97, 0.0
    %100 = vrot.lane.b32.xlu0 %v98, 1
    %v101 = vpop.permute.xlu0 %100
    %vm103 = vcmask 7168
    %v104 = vsel %vm103, 0.0, %v101
    %v105 = vsel %vm84, 1, 0
    %vm106 = vcmp.eq.s32.totalorder %v105, 1
    %v107 = vsel %vm106, %v104, 0.0
    %108 = vrot.lane.b32.xlu0 %v98, 127
    %v109 = vpop.permute.xlu0 %108
    %vm111 = vcmask 1039360
    %v112 = vsel %vm111, %v109, 0.0
    %v113 = vsel %vm85, 1, 0
    %vm114 = vcmp.eq.s32.totalorder %v113, 1
    %v115 = vsel %vm114, %v112, 0.0
    %v116 = vld [vmem:[#allocation7] sm:$0xff]
    %s117 = scalar_lea.vmem [#allocation7], 8
    %v118 = vld [vmem:[%s117] sm:$0xff]
    %vm119 = vcmask 64512
    %v121 = vsel %vm119, %v118, 0
    %123 = vmatprep.subr.mxu0 0.0
    %124 = vmatpush1.msra.mxu0 %v98
    %125 = vmatprep.subr.mxu0 0.0
    %126 = vmatpush1.msra.mxu0 0.0
    %127 = vmatprep.subr.mxu0 0.0
    %128 = vmatpush1.msra.mxu0 0.0
    %129 = vmatprep.subr.mxu0 0.0
    %130 = vmatpush1.msra.mxu0 0.0
    %131 = vmatprep.subr.mxu0 0.0
    %132 = vmatpush1.msra.mxu0 0.0
    %133 = vmatprep.subr.mxu0 0.0
    %134 = vmatpush1.msra.mxu0 0.0
    %135 = vmatprep.subr.mxu0 0.0
    %136 = vmatpush1.msra.mxu0 0.0
    %137 = vmatprep.subr.mxu0 0.0
    %138 = vmatpush1.msra.mxu0 0.0
    %139 = vmatprep.subr.mxu0 0.0
    %140 = vmatpush1.msra.mxu0 0.0
    %141 = vmatprep.subr.mxu0 0.0
    %142 = vmatpush1.msra.mxu0 0.0
    %143 = vmatprep.subr.mxu0 0.0
    %144 = vmatpush1.msra.mxu0 0.0
    %145 = vmatprep.subr.mxu0 0.0
    %146 = vmatpush1.msra.mxu0 0.0
    %147 = vmatprep.subr.mxu0 0.0
    %148 = vmatpush1.msra.mxu0 0.0
    %149 = vmatprep.subr.mxu0 0.0
    %150 = vmatpush1.msra.mxu0 0.0
    %151 = vmatprep.subr.mxu0 0.0
    %152 = vmatpush1.msra.mxu0 0.0
    %153 = vmatprep.subr.mxu0 0.0
    %154 = vmatpush1.msra.mxu0 0.0
    %155 = vmatprep.subr.mxu0 0.0
    %156 = vmatpush1.msra.mxu0 0.0
    %157 = vmatprep.subr.mxu0 0.0
    %158 = vmatpush1.msra.mxu0 0.0
    %159 = vmatprep.subr.mxu0 0.0
    %160 = vmatpush1.msra.mxu0 0.0
    %161 = vmatprep.subr.mxu0 0.0
    %162 = vmatpush1.msra.mxu0 0.0
    %163 = vmatprep.subr.mxu0 0.0
    %164 = vmatpush1.msra.mxu0 0.0
    %165 = vmatprep.subr.mxu0 0.0
    %166 = vmatpush1.msra.mxu0 0.0
    %167 = vmatprep.subr.mxu0 0.0
    %168 = vmatpush1.msra.mxu0 0.0
    %169 = vmatprep.subr.mxu0 0.0
    %170 = vmatpush1.msra.mxu0 0.0
    %171 = vmatprep.subr.mxu0 0.0
    %172 = vmatpush1.msra.mxu0 0.0
    %173 = vmatprep.subr.mxu0 0.0
    %174 = vmatpush1.msra.mxu0 0.0
    %175 = vmatprep.subr.mxu0 0.0
    %176 = vmatpush1.msra.mxu0 0.0
    %177 = vmatprep.subr.mxu0 0.0
    %178 = vmatpush1.msra.mxu0 0.0
    %179 = vmatprep.subr.mxu0 0.0
    %180 = vmatpush1.msra.mxu0 0.0
    %181 = vmatprep.subr.mxu0 0.0
    %182 = vmatpush1.msra.mxu0 0.0
    %183 = vmatprep.subr.mxu0 0.0
    %184 = vmatpush1.msra.mxu0 0.0
    %185 = vmatprep.subr.mxu0 0.0
    %186 = vmatpush1.msra.mxu0 0.0
    %187 = vmatprep.mubr.f32.mxu0 0.0
    %188 = vmatmul.mubr.f32.gmra.mrb[0].mxu0 %v121
    %v189 = vpop.f32.mrb[0].mxu0
    %v190 = vadd.f32 0.0, %v189
    %v191 = vpop.f32.mrb[0].mxu0
    %192 = vdwg.mxu0
    %v194 = vsel %vm119, %v116, 0
    %196 = vmatprep.subr.mxu0 0.0
    %197 = vmatpush1.msra.mxu0 %v107
    %198 = vmatprep.subr.mxu0 0.0
    %199 = vmatpush1.msra.mxu0 0.0
    %200 = vmatprep.subr.mxu0 0.0
    %201 = vmatpush1.msra.mxu0 0.0
    %202 = vmatprep.subr.mxu0 0.0
    %203 = vmatpush1.msra.mxu0 0.0
    %204 = vmatprep.subr.mxu0 0.0
    %205 = vmatpush1.msra.mxu0 0.0
    %206 = vmatprep.subr.mxu0 0.0
    %207 = vmatpush1.msra.mxu0 0.0
    %208 = vmatprep.subr.mxu0 0.0
    %209 = vmatpush1.msra.mxu0 0.0
    %210 = vmatprep.subr.mxu0 0.0
    %211 = vmatpush1.msra.mxu0 0.0
    %212 = vmatprep.subr.mxu0 0.0
    %213 = vmatpush1.msra.mxu0 0.0
    %214 = vmatprep.subr.mxu0 0.0
    %215 = vmatpush1.msra.mxu0 0.0
    %216 = vmatprep.subr.mxu0 0.0
    %217 = vmatpush1.msra.mxu0 0.0
    %218 = vmatprep.subr.mxu0 0.0
    %219 = vmatpush1.msra.mxu0 0.0
    %220 = vmatprep.subr.mxu0 0.0
    %221 = vmatpush1.msra.mxu0 0.0
    %222 = vmatprep.subr.mxu0 0.0
    %223 = vmatpush1.msra.mxu0 0.0
    %224 = vmatprep.subr.mxu0 0.0
    %225 = vmatpush1.msra.mxu0 0.0
    %226 = vmatprep.subr.mxu0 0.0
    %227 = vmatpush1.msra.mxu0 0.0
    %228 = vmatprep.subr.mxu0 0.0
    %229 = vmatpush1.msra.mxu0 0.0
    %230 = vmatprep.subr.mxu0 0.0
    %231 = vmatpush1.msra.mxu0 0.0
    %232 = vmatprep.subr.mxu0 0.0
    %233 = vmatpush1.msra.mxu0 0.0
    %234 = vmatprep.subr.mxu0 0.0
    %235 = vmatpush1.msra.mxu0 0.0
    %236 = vmatprep.subr.mxu0 0.0
    %237 = vmatpush1.msra.mxu0 0.0
    %238 = vmatprep.subr.mxu0 0.0
    %239 = vmatpush1.msra.mxu0 0.0
    %240 = vmatprep.subr.mxu0 0.0
    %241 = vmatpush1.msra.mxu0 0.0
    %242 = vmatprep.subr.mxu0 0.0
    %243 = vmatpush1.msra.mxu0 0.0
    %244 = vmatprep.subr.mxu0 0.0
    %245 = vmatpush1.msra.mxu0 0.0
    %246 = vmatprep.subr.mxu0 0.0
    %247 = vmatpush1.msra.mxu0 0.0
    %248 = vmatprep.subr.mxu0 0.0
    %249 = vmatpush1.msra.mxu0 0.0
    %250 = vmatprep.subr.mxu0 0.0
    %251 = vmatpush1.msra.mxu0 0.0
    %252 = vmatprep.subr.mxu0 0.0
    %253 = vmatpush1.msra.mxu0 0.0
    %254 = vmatprep.subr.mxu0 0.0
    %255 = vmatpush1.msra.mxu0 0.0
    %256 = vmatprep.subr.mxu0 0.0
    %257 = vmatpush1.msra.mxu0 0.0
    %258 = vmatprep.subr.mxu0 0.0
    %259 = vmatpush1.msra.mxu0 0.0
    %260 = vmatprep.mubr.f32.mxu0 0.0
    %261 = vmatmul.mubr.f32.gmra.mrb[0].mxu0 %v194
    %v262 = vpop.f32.mrb[0].mxu0
    %v263 = vadd.f32 %v190, %v262
    %v264 = vpop.f32.mrb[0].mxu0
    %265 = vdwg.mxu0
    %s266 = scalar_lea.vmem [#allocation7], 16
    %v267 = vld [vmem:[%s266] sm:$0xff]
    %v269 = vsel %vm119, %v267, 0
    %271 = vmatprep.subr.mxu0 0.0
    %272 = vmatpush1.msra.mxu0 %v115
    %273 = vmatprep.subr.mxu0 0.0
    %274 = vmatpush1.msra.mxu0 0.0
    %275 = vmatprep.subr.mxu0 0.0
    %276 = vmatpush1.msra.mxu0 0.0
    %277 = vmatprep.subr.mxu0 0.0
    %278 = vmatpush1.msra.mxu0 0.0
    %279 = vmatprep.subr.mxu0 0.0
    %280 = vmatpush1.msra.mxu0 0.0
    %281 = vmatprep.subr.mxu0 0.0
    %282 = vmatpush1.msra.mxu0 0.0
    %283 = vmatprep.subr.mxu0 0.0
    %284 = vmatpush1.msra.mxu0 0.0
    %285 = vmatprep.subr.mxu0 0.0
    %286 = vmatpush1.msra.mxu0 0.0
    %287 = vmatprep.subr.mxu0 0.0
    %288 = vmatpush1.msra.mxu0 0.0
    %289 = vmatprep.subr.mxu0 0.0
    %290 = vmatpush1.msra.mxu0 0.0
    %291 = vmatprep.subr.mxu0 0.0
    %292 = vmatpush1.msra.mxu0 0.0
    %293 = vmatprep.subr.mxu0 0.0
    %294 = vmatpush1.msra.mxu0 0.0
    %295 = vmatprep.subr.mxu0 0.0
    %296 = vmatpush1.msra.mxu0 0.0
    %297 = vmatprep.subr.mxu0 0.0
    %298 = vmatpush1.msra.mxu0 0.0
    %299 = vmatprep.subr.mxu0 0.0
    %300 = vmatpush1.msra.mxu0 0.0
    %301 = vmatprep.subr.mxu0 0.0
    %302 = vmatpush1.msra.mxu0 0.0
    %303 = vmatprep.subr.mxu0 0.0
    %304 = vmatpush1.msra.mxu0 0.0
    %305 = vmatprep.subr.mxu0 0.0
    %306 = vmatpush1.msra.mxu0 0.0
    %307 = vmatprep.subr.mxu0 0.0
    %308 = vmatpush1.msra.mxu0 0.0
    %309 = vmatprep.subr.mxu0 0.0
    %310 = vmatpush1.msra.mxu0 0.0
    %311 = vmatprep.subr.mxu0 0.0
    %312 = vmatpush1.msra.mxu0 0.0
    %313 = vmatprep.subr.mxu0 0.0
    %314 = vmatpush1.msra.mxu0 0.0
    %315 = vmatprep.subr.mxu0 0.0
    %316 = vmatpush1.msra.mxu0 0.0
    %317 = vmatprep.subr.mxu0 0.0
    %318 = vmatpush1.msra.mxu0 0.0
    %319 = vmatprep.subr.mxu0 0.0
    %320 = vmatpush1.msra.mxu0 0.0
    %321 = vmatprep.subr.mxu0 0.0
    %322 = vmatpush1.msra.mxu0 0.0
    %323 = vmatprep.subr.mxu0 0.0
    %324 = vmatpush1.msra.mxu0 0.0
    %325 = vmatprep.subr.mxu0 0.0
    %326 = vmatpush1.msra.mxu0 0.0
    %327 = vmatprep.subr.mxu0 0.0
    %328 = vmatpush1.msra.mxu0 0.0
    %329 = vmatprep.subr.mxu0 0.0
    %330 = vmatpush1.msra.mxu0 0.0
    %331 = vmatprep.subr.mxu0 0.0
    %332 = vmatpush1.msra.mxu0 0.0
    %333 = vmatprep.subr.mxu0 0.0
    %334 = vmatpush1.msra.mxu0 0.0
    %335 = vmatprep.mubr.f32.mxu0 0.0
    %336 = vmatmul.mubr.f32.gmra.mrb[0].mxu0 %v269
    %v337 = vpop.f32.mrb[0].mxu0
    %v338 = vadd.f32 0.0, %v337
    %v339 = vpop.f32.mrb[0].mxu0
    %340 = vdwg.mxu0
    %v341 = vadd.f32 %v263, %v338
    %342 = vset.pattern.permute.xlu0 2
    %343 = vperm.xlu0 %342, %v86
    %v344 = vpop.permute.xlu0 %343
    %v346 = vadd.f32 %v341, %v344
    %347 = vset.pattern.permute.xlu0 3
    %348 = vperm.xlu0 %347, %v86
    %v349 = vpop.permute.xlu0 %348
    %v351 = vmul.f32 %v349, %v346
    %352 = vset.pattern.permute.xlu0 4
    %353 = vperm.xlu0 %352, %v86
    %v354 = vpop.permute.xlu0 %353
    %v356 = vadd.f32 %v351, %v354
    %v357 = vmax.f32 %v356, 0.0
    %359 = vrot.lane.b32.xlu0 %v357, 1
    %v360 = vpop.permute.xlu0 %359
    %v362 = vsel %vm103, 0.0, %v360
    %v363 = vsel %vm106, %v362, 0.0
    %364 = vrot.lane.b32.xlu0 %v357, 127
    %v365 = vpop.permute.xlu0 %364
    %v367 = vsel %vm111, %v365, 0.0
    %v368 = vsel %vm114, %v367, 0.0
    %v369 = vld [vmem:[#allocation8] sm:$0xff]
    %s370 = scalar_lea.vmem [#allocation8], 8
    %v371 = vld [vmem:[%s370] sm:$0xff]
    %v373 = vsel %vm119, %v371, 0
    %375 = vmatprep.subr.mxu0 0.0
    %376 = vmatpush1.msra.mxu0 %v357
    %377 = vmatprep.subr.mxu0 0.0
    %378 = vmatpush1.msra.mxu0 0.0
    %379 = vmatprep.subr.mxu0 0.0
    %380 = vmatpush1.msra.mxu0 0.0
    %381 = vmatprep.subr.mxu0 0.0
    %382 = vmatpush1.msra.mxu0 0.0
    %383 = vmatprep.subr.mxu0 0.0
    %384 = vmatpush1.msra.mxu0 0.0
    %385 = vmatprep.subr.mxu0 0.0
    %386 = vmatpush1.msra.mxu0 0.0
    %387 = vmatprep.subr.mxu0 0.0
    %388 = vmatpush1.msra.mxu0 0.0
    %389 = vmatprep.subr.mxu0 0.0
    %390 = vmatpush1.msra.mxu0 0.0
    %391 = vmatprep.subr.mxu0 0.0
    %392 = vmatpush1.msra.mxu0 0.0
    %393 = vmatprep.subr.mxu0 0.0
    %394 = vmatpush1.msra.mxu0 0.0
    %395 = vmatprep.subr.mxu0 0.0
    %396 = vmatpush1.msra.mxu0 0.0
    %397 = vmatprep.subr.mxu0 0.0
    %398 = vmatpush1.msra.mxu0 0.0
    %399 = vmatprep.subr.mxu0 0.0
    %400 = vmatpush1.msra.mxu0 0.0
    %401 = vmatprep.subr.mxu0 0.0
    %402 = vmatpush1.msra.mxu0 0.0
    %403 = vmatprep.subr.mxu0 0.0
    %404 = vmatpush1.msra.mxu0 0.0
    %405 = vmatprep.subr.mxu0 0.0
    %406 = vmatpush1.msra.mxu0 0.0
    %407 = vmatprep.subr.mxu0 0.0
    %408 = vmatpush1.msra.mxu0 0.0
    %409 = vmatprep.subr.mxu0 0.0
    %410 = vmatpush1.msra.mxu0 0.0
    %411 = vmatprep.subr.mxu0 0.0
    %412 = vmatpush1.msra.mxu0 0.0
    %413 = vmatprep.subr.mxu0 0.0
    %414 = vmatpush1.msra.mxu0 0.0
    %415 = vmatprep.subr.mxu0 0.0
    %416 = vmatpush1.msra.mxu0 0.0
    %417 = vmatprep.subr.mxu0 0.0
    %418 = vmatpush1.msra.mxu0 0.0
    %419 = vmatprep.subr.mxu0 0.0
    %420 = vmatpush1.msra.mxu0 0.0
    %421 = vmatprep.subr.mxu0 0.0
    %422 = vmatpush1.msra.mxu0 0.0
    %423 = vmatprep.subr.mxu0 0.0
    %424 = vmatpush1.msra.mxu0 0.0
    %425 = vmatprep.subr.mxu0 0.0
    %426 = vmatpush1.msra.mxu0 0.0
    %427 = vmatprep.subr.mxu0 0.0
    %428 = vmatpush1.msra.mxu0 0.0
    %429 = vmatprep.subr.mxu0 0.0
    %430 = vmatpush1.msra.mxu0 0.0
    %431 = vmatprep.subr.mxu0 0.0
    %432 = vmatpush1.msra.mxu0 0.0
    %433 = vmatprep.subr.mxu0 0.0
    %434 = vmatpush1.msra.mxu0 0.0
    %435 = vmatprep.subr.mxu0 0.0
    %436 = vmatpush1.msra.mxu0 0.0
    %437 = vmatprep.subr.mxu0 0.0
    %438 = vmatpush1.msra.mxu0 0.0
    %439 = vmatprep.mubr.f32.mxu0 0.0
    %440 = vmatmul.mubr.f32.gmra.mrb[0].mxu0 %v373
    %v441 = vpop.f32.mrb[0].mxu0
    %v442 = vadd.f32 0.0, %v441
    %v443 = vpop.f32.mrb[0].mxu0
    %444 = vdwg.mxu0
    %v446 = vsel %vm119, %v369, 0
    %448 = vmatprep.subr.mxu0 0.0
    %449 = vmatpush1.msra.mxu0 %v363
    %450 = vmatprep.subr.mxu0 0.0
    %451 = vmatpush1.msra.mxu0 0.0
    %452 = vmatprep.subr.mxu0 0.0
    %453 = vmatpush1.msra.mxu0 0.0
    %454 = vmatprep.subr.mxu0 0.0
    %455 = vmatpush1.msra.mxu0 0.0
    %456 = vmatprep.subr.mxu0 0.0
    %457 = vmatpush1.msra.mxu0 0.0
    %458 = vmatprep.subr.mxu0 0.0
    %459 = vmatpush1.msra.mxu0 0.0
    %460 = vmatprep.subr.mxu0 0.0
    %461 = vmatpush1.msra.mxu0 0.0
    %462 = vmatprep.subr.mxu0 0.0
    %463 = vmatpush1.msra.mxu0 0.0
    %464 = vmatprep.subr.mxu0 0.0
    %465 = vmatpush1.msra.mxu0 0.0
    %466 = vmatprep.subr.mxu0 0.0
    %467 = vmatpush1.msra.mxu0 0.0
    %468 = vmatprep.subr.mxu0 0.0
    %469 = vmatpush1.msra.mxu0 0.0
    %470 = vmatprep.subr.mxu0 0.0
    %471 = vmatpush1.msra.mxu0 0.0
    %472 = vmatprep.subr.mxu0 0.0
    %473 = vmatpush1.msra.mxu0 0.0
    %474 = vmatprep.subr.mxu0 0.0
    %475 = vmatpush1.msra.mxu0 0.0
    %476 = vmatprep.subr.mxu0 0.0
    %477 = vmatpush1.msra.mxu0 0.0
    %478 = vmatprep.subr.mxu0 0.0
    %479 = vmatpush1.msra.mxu0 0.0
    %480 = vmatprep.subr.mxu0 0.0
    %481 = vmatpush1.msra.mxu0 0.0
    %482 = vmatprep.subr.mxu0 0.0
    %483 = vmatpush1.msra.mxu0 0.0
    %484 = vmatprep.subr.mxu0 0.0
    %485 = vmatpush1.msra.mxu0 0.0
    %486 = vmatprep.subr.mxu0 0.0
    %487 = vmatpush1.msra.mxu0 0.0
    %488 = vmatprep.subr.mxu0 0.0
    %489 = vmatpush1.msra.mxu0 0.0
    %490 = vmatprep.subr.mxu0 0.0
    %491 = vmatpush1.msra.mxu0 0.0
    %492 = vmatprep.subr.mxu0 0.0
    %493 = vmatpush1.msra.mxu0 0.0
    %494 = vmatprep.subr.mxu0 0.0
    %495 = vmatpush1.msra.mxu0 0.0
    %496 = vmatprep.subr.mxu0 0.0
    %497 = vmatpush1.msra.mxu0 0.0
    %498 = vmatprep.subr.mxu0 0.0
    %499 = vmatpush1.msra.mxu0 0.0
    %500 = vmatprep.subr.mxu0 0.0
    %501 = vmatpush1.msra.mxu0 0.0
    %502 = vmatprep.subr.mxu0 0.0
    %503 = vmatpush1.msra.mxu0 0.0
    %504 = vmatprep.subr.mxu0 0.0
    %505 = vmatpush1.msra.mxu0 0.0
    %506 = vmatprep.subr.mxu0 0.0
    %507 = vmatpush1.msra.mxu0 0.0
    %508 = vmatprep.subr.mxu0 0.0
    %509 = vmatpush1.msra.mxu0 0.0
    %510 = vmatprep.subr.mxu0 0.0
    %511 = vmatpush1.msra.mxu0 0.0
    %512 = vmatprep.mubr.f32.mxu0 0.0
    %513 = vmatmul.mubr.f32.gmra.mrb[0].mxu0 %v446
    %v514 = vpop.f32.mrb[0].mxu0
    %v515 = vadd.f32 %v442, %v514
    %v516 = vpop.f32.mrb[0].mxu0
    %517 = vdwg.mxu0
    %s518 = scalar_lea.vmem [#allocation8], 16
    %v519 = vld [vmem:[%s518] sm:$0xff]
    %v521 = vsel %vm119, %v519, 0
    %523 = vmatprep.subr.mxu0 0.0
    %524 = vmatpush1.msra.mxu0 %v368
    %525 = vmatprep.subr.mxu0 0.0
    %526 = vmatpush1.msra.mxu0 0.0
    %527 = vmatprep.subr.mxu0 0.0
    %528 = vmatpush1.msra.mxu0 0.0
    %529 = vmatprep.subr.mxu0 0.0
    %530 = vmatpush1.msra.mxu0 0.0
    %531 = vmatprep.subr.mxu0 0.0
    %532 = vmatpush1.msra.mxu0 0.0
    %533 = vmatprep.subr.mxu0 0.0
    %534 = vmatpush1.msra.mxu0 0.0
    %535 = vmatprep.subr.mxu0 0.0
    %536 = vmatpush1.msra.mxu0 0.0
    %537 = vmatprep.subr.mxu0 0.0
    %538 = vmatpush1.msra.mxu0 0.0
    %539 = vmatprep.subr.mxu0 0.0
    %540 = vmatpush1.msra.mxu0 0.0
    %541 = vmatprep.subr.mxu0 0.0
    %542 = vmatpush1.msra.mxu0 0.0
    %543 = vmatprep.subr.mxu0 0.0
    %544 = vmatpush1.msra.mxu0 0.0
    %545 = vmatprep.subr.mxu0 0.0
    %546 = vmatpush1.msra.mxu0 0.0
    %547 = vmatprep.subr.mxu0 0.0
    %548 = vmatpush1.msra.mxu0 0.0
    %549 = vmatprep.subr.mxu0 0.0
    %550 = vmatpush1.msra.mxu0 0.0
    %551 = vmatprep.subr.mxu0 0.0
    %552 = vmatpush1.msra.mxu0 0.0
    %553 = vmatprep.subr.mxu0 0.0
    %554 = vmatpush1.msra.mxu0 0.0
    %555 = vmatprep.subr.mxu0 0.0
    %556 = vmatpush1.msra.mxu0 0.0
    %557 = vmatprep.subr.mxu0 0.0
    %558 = vmatpush1.msra.mxu0 0.0
    %559 = vmatprep.subr.mxu0 0.0
    %560 = vmatpush1.msra.mxu0 0.0
    %561 = vmatprep.subr.mxu0 0.0
    %562 = vmatpush1.msra.mxu0 0.0
    %563 = vmatprep.subr.mxu0 0.0
    %564 = vmatpush1.msra.mxu0 0.0
    %565 = vmatprep.subr.mxu0 0.0
    %566 = vmatpush1.msra.mxu0 0.0
    %567 = vmatprep.subr.mxu0 0.0
    %568 = vmatpush1.msra.mxu0 0.0
    %569 = vmatprep.subr.mxu0 0.0
    %570 = vmatpush1.msra.mxu0 0.0
    %571 = vmatprep.subr.mxu0 0.0
    %572 = vmatpush1.msra.mxu0 0.0
    %573 = vmatprep.subr.mxu0 0.0
    %574 = vmatpush1.msra.mxu0 0.0
    %575 = vmatprep.subr.mxu0 0.0
    %576 = vmatpush1.msra.mxu0 0.0
    %577 = vmatprep.subr.mxu0 0.0
    %578 = vmatpush1.msra.mxu0 0.0
    %579 = vmatprep.subr.mxu0 0.0
    %580 = vmatpush1.msra.mxu0 0.0
    %581 = vmatprep.subr.mxu0 0.0
    %582 = vmatpush1.msra.mxu0 0.0
    %583 = vmatprep.subr.mxu0 0.0
    %584 = vmatpush1.msra.mxu0 0.0
    %585 = vmatprep.subr.mxu0 0.0
    %586 = vmatpush1.msra.mxu0 0.0
    %587 = vmatprep.mubr.f32.mxu0 0.0
    %588 = vmatmul.mubr.f32.gmra.mrb[0].mxu0 %v521
    %v589 = vpop.f32.mrb[0].mxu0
    %v590 = vadd.f32 0.0, %v589
    %v591 = vpop.f32.mrb[0].mxu0
    %592 = vdwg.mxu0
    %v593 = vadd.f32 %v515, %v590
    %594 = vset.pattern.permute.xlu0 5
    %595 = vperm.xlu0 %594, %v86
    %v596 = vpop.permute.xlu0 %595
    %v598 = vadd.f32 %v593, %v596
    %v599 = vadd.f32 %v69, %v598
    %600 = vst [vmem:[#allocation10] sm:$0xff] %v599
    // Predicated region
    $region34: #{tpu_custom_call.1} parent=1 // pred_check
      _
    $region35: #{tpu_custom_call.1} parent=1 // pred_check_branch
      %602 = sbr.rel (0) target = $region37
    $region36: #{tpu_custom_call.1} parent=1 // pred_region
      %s604 = ssub.s32 128, 128
      %605 = vsyncadd [#allocation4], %s604
      %s607 = sshll.u32 [#allocation10], 4
      %s608 = int_to_ptr.vmem [resolvable:$true] %s607
      %610 = dma.vmem_to_hbm [thread:$0]  %s608, 128, %s4, [#allocation4]
    $region37: #{tpu_custom_call.1} parent=1 // pred_fallthru
      _
    // Predicated region
    $region38: #{tpu_custom_call.1} parent=1 // pred_check
      _
    $region39: #{tpu_custom_call.1} parent=1 // pred_check_branch
      %612 = sbr.rel (0) target = $region41
    $region40: #{tpu_custom_call.1} parent=1 // pred_region
      %613 = dma.done [#allocation4], 128
    $region41: #{tpu_custom_call.1} parent=1 // pred_fallthru
      _
    %614 = vsyncpa [#allocation3], 1
    %615 = vsyncpa [#allocation6], 1
    %616 = vsyncpa [#allocation9], 1
    %617 = vsyncpa [#allocation4], 1

</llo_original>
